<compile_context>
chip_gen: v7x
topology: tpu7x:2x2x1
jax: 0.10.0
libtpu: 0.0.40
codegen_flags: <defaults>
</compile_context>

<pallas_src>
import functools

import numpy as np
import jax
import jax.numpy as jnp
from jax.experimental import pallas as pl
from jax.experimental.pallas import tpu as pltpu


_VMEM_BUDGET = 12 << 20   # double-buffered in+out budget (fits v5e 16 MiB scoped)
_VMEM_LIMIT = 32 << 20    # explicit scoped limit: valid on v5e/v6e/v7x


# ---------------------------------------------------------------------------
# Kernels
# ---------------------------------------------------------------------------
def _end_kernel(prefix_ref, ctx_ref, suffix_ref, out_ref, *, n_ctx, csc):
    """class_token_position == 'end': out = [prefix | ctx | suffix] per class."""
    cb = out_ref.shape[0]                       # classes per grid step (static)
    out_ref[:, 0:1, :] = prefix_ref[...]
    if csc:
        out_ref[:, 1:1 + n_ctx, :] = ctx_ref[...]
    else:
        ctx = ctx_ref[...]                      # (n_ctx, dim), VMEM-resident block
        for c in range(cb):                     # static unroll, reuses same vregs
            out_ref[c, 1:1 + n_ctx, :] = ctx
    out_ref[:, 1 + n_ctx:, :] = suffix_ref[...]


def _moved_kernel(dest_ref, prefix_ref, ctx_ref, suffix_ref, out_ref, *,
                  n_ctx, max_len, csc):
    """'middle' / 'front'.

    Rows that never move (prefix row 0 and the suffix tail past max(name_lens))
    are bulk copies.  The n_ctx + max_len rows that do move are scattered
    row-by-row to destination indices prefetched into SMEM (dest_ref), avoiding
    any permutation-matrix HBM traffic and any full-tile f32 round trip.
    """
    cb = out_ref.shape[0]
    n_suffix = suffix_ref.shape[1]
    n_move = n_ctx + max_len
    blk = pl.program_id(0)

    # Identity part: prefix and the tail suffix rows.
    out_ref[:, 0:1, :] = prefix_ref[...]
    if max_len < n_suffix:
        out_ref[:, 1 + n_ctx + max_len:, :] = suffix_ref[:, max_len:, :]

    # Moving part: scatter ctx rows and the head suffix rows (class tokens).
    for c in range(cb):                         # static unroll over the block
        base = (blk * cb + c) * n_move          # row base into the SMEM table
        for m in range(n_ctx):                  # context rows
            d = dest_ref[base + m]
            src = ctx_ref[c, m:m + 1, :] if csc else ctx_ref[m:m + 1, :]
            out_ref[c, pl.ds(d, 1), :] = src
        for j in range(max_len):                # class-name (head suffix) rows
            d = dest_ref[base + n_ctx + j]
            out_ref[c, pl.ds(d, 1), :] = suffix_ref[c, j:j + 1, :]


# ---------------------------------------------------------------------------
# Host-side helpers
# ---------------------------------------------------------------------------
def _choose_cb(n_cls, per_class_bytes, max_cb):
    """Classes per grid step: big HBM slabs, >=2 grid steps (megacore), prefer a
    divisor of n_cls (no padding) and an even grid (two v7x TensorCores)."""
    target = int(max(1, min(max_cb, _VMEM_BUDGET // max(per_class_bytes, 1))))
    if target >= n_cls:
        target = int(pl.cdiv(n_cls, 2)) if n_cls >= 2 else 1
    divisors = [c for c in range(target, max(1, target // 2) - 1, -1)
                if n_cls % c == 0]
    even = [c for c in divisors if (n_cls // c) % 2 == 0]
    if even:
        return even[0]
    if divisors:
        return divisors[0]
    return target                               # caller pads n_cls to a multiple


def _build_dest_table(position, n_cls, n_cls_pad, n_ctx, max_len, name_lens):
    """int32 (n_cls_pad * (n_ctx + max_len),) table of output-row destinations.

    Entry [i, m]          (m <  n_ctx)  : destination row of ctx[m] for class i.
    Entry [i, n_ctx + j]  (j < max_len) : destination row of suffix[i, j].
    Padded classes (and j >= name_len) use identity destinations.
    """
    n_move = n_ctx + max_len
    dest = np.zeros((n_cls_pad, n_move), np.int32)
    dest[:, :n_ctx] = 1 + np.arange(n_ctx, dtype=np.int32)
    if max_len:
        dest[:, n_ctx:] = 1 + n_ctx + np.arange(max_len, dtype=np.int32)
    half = n_ctx // 2
    for i in range(n_cls):
        L = int(name_lens[i])
        for m in range(n_ctx):
            if position == "front":
                dest[i, m] = 1 + L + m
            else:                               # 'middle'
                dest[i, m] = 1 + m if m < half else 1 + L + m
        for j in range(max_len):
            if j < L:
                dest[i, n_ctx + j] = (1 + j) if position == "front" else (1 + half + j)
            # else: identity (already filled)
    return jnp.asarray(dest.reshape(-1))


def prompt_learner_forward(ctx, token_prefix, token_suffix, name_lens,
                           class_token_position="end"):
    """Equivalent of PromptLearner.forward(): returns (n_cls, seq_len, ctx_dim)."""
    n_cls, _, dim = token_prefix.shape
    n_suffix = token_suffix.shape[1]
    n_ctx = ctx.shape[-2]
    seq_len = 1 + n_ctx + n_suffix
    dtype = token_prefix.dtype
    itemsize = np.dtype(dtype).itemsize
    csc = (ctx.ndim == 3)                       # class-specific contexts

    # Per-class double-buffered in+out traffic (pure copy kernel).
    per_class = 2 * 2 * seq_len * dim * itemsize
    max_cb = 16 if class_token_position == "end" else 8
    cb = _choose_cb(n_cls, per_class, max_cb)
    n_blocks = int(pl.cdiv(n_cls, cb))
    n_cls_pad = n_blocks * cb
    pad = n_cls_pad - n_cls

    prefix_p, suffix_p, ctx_p = token_prefix, token_suffix, ctx
    if pad:                                     # pad class axis, slice off later
        prefix_p = jnp.pad(token_prefix, ((0, pad), (0, 0), (0, 0)))
        suffix_p = jnp.pad(token_suffix, ((0, pad), (0, 0), (0, 0)))
        if csc:
            ctx_p = jnp.pad(ctx, ((0, pad), (0, 0), (0, 0)))

    bytes_accessed = int((prefix_p.size + suffix_p.size + ctx_p.size
                          + n_cls_pad * seq_len * dim) * itemsize)
    cost = pl.CostEstimate(flops=0, transcendentals=0,
                           bytes_accessed=bytes_accessed)
    cparams = pltpu.CompilerParams(dimension_semantics=("parallel",),
                                   vmem_limit_bytes=_VMEM_LIMIT)
    grid = (n_blocks,)

    if class_token_position == "end":
        if csc:
            ctx_spec = pl.BlockSpec((cb, n_ctx, dim), lambda i: (i, 0, 0))
        else:
            ctx_spec = pl.BlockSpec((n_ctx, dim), lambda i: (0, 0))   # resident
        out = pl.pallas_call(
            functools.partial(_end_kernel, n_ctx=n_ctx, csc=csc),
            out_shape=jax.ShapeDtypeStruct((n_cls_pad, seq_len, dim), dtype),
            grid_spec=pltpu.PrefetchScalarGridSpec(
                num_scalar_prefetch=0,
                grid=grid,
                in_specs=[pl.BlockSpec((cb, 1, dim), lambda i: (i, 0, 0)),
                          ctx_spec,
                          pl.BlockSpec((cb, n_suffix, dim), lambda i: (i, 0, 0))],
                out_specs=pl.BlockSpec((cb, seq_len, dim), lambda i: (i, 0, 0)),
            ),
            compiler_params=cparams,
            cost_estimate=cost,
        )(prefix_p, ctx_p, suffix_p)
        return out[:n_cls] if pad else out

    if class_token_position not in ("middle", "front"):
        raise ValueError(class_token_position)

    # name_lens must be static Python ints (a change re-traces the table).
    name_lens = [int(l) for l in name_lens]
    assert len(name_lens) == n_cls
    assert all(0 <= l <= n_suffix for l in name_lens), "name_lens out of range"
    max_len = max(name_lens) if name_lens else 0
    dest = _build_dest_table(class_token_position, n_cls, n_cls_pad,
                             n_ctx, max_len, name_lens)

    if csc:
        ctx_spec = pl.BlockSpec((cb, n_ctx, dim), lambda i, dest_ref: (i, 0, 0))
    else:
        ctx_spec = pl.BlockSpec((n_ctx, dim), lambda i, dest_ref: (0, 0))  # resident

    out = pl.pallas_call(
        functools.partial(_moved_kernel, n_ctx=n_ctx, max_len=max_len, csc=csc),
        out_shape=jax.ShapeDtypeStruct((n_cls_pad, seq_len, dim), dtype),
        grid_spec=pltpu.PrefetchScalarGridSpec(
            num_scalar_prefetch=1,              # dest table -> SMEM
            grid=grid,
            in_specs=[pl.BlockSpec((cb, 1, dim), lambda i, dest_ref: (i, 0, 0)),
                      ctx_spec,
                      pl.BlockSpec((cb, n_suffix, dim),
                                   lambda i, dest_ref: (i, 0, 0))],
            out_specs=pl.BlockSpec((cb, seq_len, dim),
                                   lambda i, dest_ref: (i, 0, 0)),
        ),
        compiler_params=cparams,
        cost_estimate=cost,
    )(dest, prefix_p, ctx_p, suffix_p)
    return out[:n_cls] if pad else out


# ---------------------------------------------------------------------------
# Pure-numpy reference mirroring the PyTorch forward (for verification)
# ---------------------------------------------------------------------------
def reference_forward(ctx, prefix, suffix, name_lens, position):
    ctx = np.asarray(ctx)
    prefix = np.asarray(prefix)
    suffix = np.asarray(suffix)
    n_cls = prefix.shape[0]
    n_ctx = ctx.shape[-2]
    if ctx.ndim == 2:
        ctx = np.broadcast_to(ctx[None], (n_cls,) + ctx.shape)
    if position == "end":
        return np.concatenate([prefix, ctx, suffix], axis=1)
    half = n_ctx // 2
    prompts = []
    for i in range(n_cls):
        length = int(name_lens[i])
        prefix_i = prefix[i:i + 1]
        class_i = suffix[i:i + 1, :length]
        suffix_i = suffix[i:i + 1, length:]
        if position == "middle":
            prompt = np.concatenate(
                [prefix_i, ctx[i:i + 1, :half], class_i,
                 ctx[i:i + 1, half:], suffix_i], axis=1)
        elif position == "front":
            prompt = np.concatenate(
                [prefix_i, class_i, ctx[i:i + 1], suffix_i], axis=1)
        else:
            raise ValueError(position)
        prompts.append(prompt)
    return np.concatenate(prompts, axis=0)


# ---------------------------------------------------------------------------
# Demo / self-check
# ---------------------------------------------------------------------------
if __name__ == "__main__":
    key = jax.random.PRNGKey(0)
    k1, k2, k3, k4, k5, k6 = jax.random.split(key, 6)
    dim = 512                                   # CLIP-like ctx_dim (lane-dense)

    # Case A: generic (shared) context, 12 classes -> even grid, no padding.
    n_cls_a, n_ctx_a, n_suf_a = 12, 8, 15       # seq_len = 1 + 8 + 15 = 24
    name_lens_a = [1, 2, 3, 1, 4, 2, 1, 3, 2, 5, 1, 2]
    pre_a = jax.random.normal(k1, (n_cls_a, 1, dim), jnp.float32)
    suf_a = jax.random.normal(k2, (n_cls_a, n_suf_a, dim), jnp.float32)
    ctx_a = 0.02 * jax.random.normal(k3, (n_ctx_a, dim), jnp.float32)

    # Case B: class-specific contexts (CSC), 7 classes -> exercises host padding.
    n_cls_b, n_ctx_b, n_suf_b = 7, 8, 15
    name_lens_b = [1, 2, 5, 3, 2, 4, 1]
    pre_b = jax.random.normal(k4, (n_cls_b, 1, dim), jnp.float32)
    suf_b = jax.random.normal(k5, (n_cls_b, n_suf_b, dim), jnp.float32)
    ctx_b = 0.02 * jax.random.normal(k6, (n_cls_b, n_ctx_b, dim), jnp.float32)

    cases = [("generic", ctx_a, pre_a, suf_a, name_lens_a),
             ("csc", ctx_b, pre_b, suf_b, name_lens_b)]
    for tag, ctx_c, pre_c, suf_c, lens_c in cases:
        for pos in ("end", "middle", "front"):
            out = prompt_learner_forward(ctx_c, pre_c, suf_c, lens_c,
                                         class_token_position=pos)
            out = jax.block_until_ready(out)
            ref = reference_forward(ctx_c, pre_c, suf_c, lens_c, pos)
            assert out.shape == ref.shape, (tag, pos, out.shape, ref.shape)
            assert out.dtype == jnp.float32
            assert np.allclose(np.asarray(out), ref, rtol=1e-6, atol=1e-6), (tag, pos)

    print("KERNEL_OK")
</pallas_src>

<mosaic_0001>
module attributes {stable_mosaic.version = 11 : i64} {
  func.func @_end_kernel(%arg0: i32, %arg1: memref<6x1x512xf32, #tpu.memory_space<vmem>>, %arg2: memref<8x512xf32, #tpu.memory_space<vmem>>, %arg3: memref<6x15x512xf32, #tpu.memory_space<vmem>>, %arg4: memref<6x24x512xf32, #tpu.memory_space<vmem>>) attributes {dimension_semantics = [#tpu.dimension_semantics<parallel>], iteration_bounds = array<i64: 2>, scalar_prefetch = 0 : i64, scratch_operands = 0 : i64, tpu.core_type = #tpu.core_type<tc>, window_params = [{transform_indices = @transform_0, window_bounds = array<i64: 6, 1, 512>}, {pipeline_mode = #tpu.pipeline_mode<synchronous>, transform_indices = @transform_1, window_bounds = array<i64: 8, 512>}, {transform_indices = @transform_2, window_bounds = array<i64: 6, 15, 512>}, {transform_indices = @transform_3, window_bounds = array<i64: 6, 24, 512>}]} {
    %c0 = arith.constant 0 : index
    %c0_0 = arith.constant 0 : index
    %c0_1 = arith.constant 0 : index
    %0 = vector.load %arg1[%c0, %c0_0, %c0_1] : memref<6x1x512xf32, #tpu.memory_space<vmem>>, vector<6x1x512xf32>
    %c0_2 = arith.constant 0 : index
    %c0_3 = arith.constant 0 : index
    %c0_4 = arith.constant 0 : index
    %1 = vector.load %arg4[%c0_2, %c0_3, %c0_4] : memref<6x24x512xf32, #tpu.memory_space<vmem>>, vector<6x1x512xf32>
    tpu.vector_store %arg4[%c0_2, %c0_3, %c0_4], %0 {strides = array<i32>} : memref<6x24x512xf32, #tpu.memory_space<vmem>>, vector<6x1x512xf32>,
    %c0_5 = arith.constant 0 : index
    %c0_6 = arith.constant 0 : index
    %2 = vector.load %arg2[%c0_5, %c0_6] : memref<8x512xf32, #tpu.memory_space<vmem>>, vector<8x512xf32>
    %c0_7 = arith.constant 0 : index
    %c1 = arith.constant 1 : index
    %c0_8 = arith.constant 0 : index
    %3 = vector.load %arg4[%c0_7, %c1, %c0_8] : memref<6x24x512xf32, #tpu.memory_space<vmem>>, vector<1x8x512xf32>
    %4 = vector.shape_cast %3 : vector<1x8x512xf32> to vector<8x512xf32>
    %5 = vector.shape_cast %2 : vector<8x512xf32> to vector<1x8x512xf32>
    tpu.vector_store %arg4[%c0_7, %c1, %c0_8], %5 {strides = array<i32>} : memref<6x24x512xf32, #tpu.memory_space<vmem>>, vector<1x8x512xf32>,
    %c1_9 = arith.constant 1 : index
    %c1_10 = arith.constant 1 : index
    %c0_11 = arith.constant 0 : index
    %6 = vector.load %arg4[%c1_9, %c1_10, %c0_11] : memref<6x24x512xf32, #tpu.memory_space<vmem>>, vector<1x8x512xf32>
    %7 = vector.shape_cast %6 : vector<1x8x512xf32> to vector<8x512xf32>
    %8 = vector.shape_cast %2 : vector<8x512xf32> to vector<1x8x512xf32>
    tpu.vector_store %arg4[%c1_9, %c1_10, %c0_11], %8 {strides = array<i32>} : memref<6x24x512xf32, #tpu.memory_space<vmem>>, vector<1x8x512xf32>,
    %c2 = arith.constant 2 : index
    %c1_12 = arith.constant 1 : index
    %c0_13 = arith.constant 0 : index
    %9 = vector.load %arg4[%c2, %c1_12, %c0_13] : memref<6x24x512xf32, #tpu.memory_space<vmem>>, vector<1x8x512xf32>
    %10 = vector.shape_cast %9 : vector<1x8x512xf32> to vector<8x512xf32>
    %11 = vector.shape_cast %2 : vector<8x512xf32> to vector<1x8x512xf32>
    tpu.vector_store %arg4[%c2, %c1_12, %c0_13], %11 {strides = array<i32>} : memref<6x24x512xf32, #tpu.memory_space<vmem>>, vector<1x8x512xf32>,
    %c3 = arith.constant 3 : index
    %c1_14 = arith.constant 1 : index
    %c0_15 = arith.constant 0 : index
    %12 = vector.load %arg4[%c3, %c1_14, %c0_15] : memref<6x24x512xf32, #tpu.memory_space<vmem>>, vector<1x8x512xf32>
    %13 = vector.shape_cast %12 : vector<1x8x512xf32> to vector<8x512xf32>
    %14 = vector.shape_cast %2 : vector<8x512xf32> to vector<1x8x512xf32>
    tpu.vector_store %arg4[%c3, %c1_14, %c0_15], %14 {strides = array<i32>} : memref<6x24x512xf32, #tpu.memory_space<vmem>>, vector<1x8x512xf32>,
    %c4 = arith.constant 4 : index
    %c1_16 = arith.constant 1 : index
    %c0_17 = arith.constant 0 : index
    %15 = vector.load %arg4[%c4, %c1_16, %c0_17] : memref<6x24x512xf32, #tpu.memory_space<vmem>>, vector<1x8x512xf32>
    %16 = vector.shape_cast %15 : vector<1x8x512xf32> to vector<8x512xf32>
    %17 = vector.shape_cast %2 : vector<8x512xf32> to vector<1x8x512xf32>
    tpu.vector_store %arg4[%c4, %c1_16, %c0_17], %17 {strides = array<i32>} : memref<6x24x512xf32, #tpu.memory_space<vmem>>, vector<1x8x512xf32>,
    %c5 = arith.constant 5 : index
    %c1_18 = arith.constant 1 : index
    %c0_19 = arith.constant 0 : index
    %18 = vector.load %arg4[%c5, %c1_18, %c0_19] : memref<6x24x512xf32, #tpu.memory_space<vmem>>, vector<1x8x512xf32>
    %19 = vector.shape_cast %18 : vector<1x8x512xf32> to vector<8x512xf32>
    %20 = vector.shape_cast %2 : vector<8x512xf32> to vector<1x8x512xf32>
    tpu.vector_store %arg4[%c5, %c1_18, %c0_19], %20 {strides = array<i32>} : memref<6x24x512xf32, #tpu.memory_space<vmem>>, vector<1x8x512xf32>,
    %c0_20 = arith.constant 0 : index
    %c0_21 = arith.constant 0 : index
    %c0_22 = arith.constant 0 : index
    %21 = vector.load %arg3[%c0_20, %c0_21, %c0_22] : memref<6x15x512xf32, #tpu.memory_space<vmem>>, vector<6x15x512xf32>
    %c0_23 = arith.constant 0 : index
    %c9 = arith.constant 9 : index
    %c0_24 = arith.constant 0 : index
    %22 = vector.load %arg4[%c0_23, %c9, %c0_24] : memref<6x24x512xf32, #tpu.memory_space<vmem>>, vector<6x15x512xf32>
    tpu.vector_store %arg4[%c0_23, %c9, %c0_24], %21 {strides = array<i32>} : memref<6x24x512xf32, #tpu.memory_space<vmem>>, vector<6x15x512xf32>,
    return
  }
  func.func @transform_0(%arg0: i32) -> (i32, i32, i32) {
    %c0_i32 = arith.constant 0 : i32
    %c0_i32_0 = arith.constant 0 : i32
    %c0_i32_1 = arith.constant 0 : i32
    return %arg0, %c0_i32, %c0_i32_0 : i32, i32, i32
  }
  func.func @transform_1(%arg0: i32) -> (i32, i32) {
    %c0_i32 = arith.constant 0 : i32
    %c0_i32_0 = arith.constant 0 : i32
    %c0_i32_1 = arith.constant 0 : i32
    return %c0_i32, %c0_i32_0 : i32, i32
  }
  func.func @transform_2(%arg0: i32) -> (i32, i32, i32) {
    %c0_i32 = arith.constant 0 : i32
    %c0_i32_0 = arith.constant 0 : i32
    %c0_i32_1 = arith.constant 0 : i32
    return %arg0, %c0_i32, %c0_i32_0 : i32, i32, i32
  }
  func.func @transform_3(%arg0: i32) -> (i32, i32, i32) {
    %c0_i32 = arith.constant 0 : i32
    %c0_i32_0 = arith.constant 0 : i32
    %c0_i32_1 = arith.constant 0 : i32
    return %arg0, %c0_i32, %c0_i32_0 : i32, i32, i32
  }
}

</mosaic_0001>

<llo_original>
// kernel: tpu_custom_call.1
$region0: #{tpu_custom_call.1}
  #allocation0 [shape = 'u32[]', space=smem, size = 0x4, offset = 0x4, fixed_abs, tag = 'smem constant byte address 0x4 - core index']
  #allocation1 [shape = 'u32[144,128]{1,0:T(1,128)}', space=vmem, size = 0x12000, scoped, tag = 'internal scratch']
  %s0 = inlined_call_operand.hbm [shape: f32[12,1,512], index: 0, kind: input, shape index: {}]
  %s1 = inlined_call_operand.hbm [shape: f32[8,512], index: 1, kind: input, shape index: {}]
  %s2 = inlined_call_operand.hbm [shape: f32[12,15,512], index: 2, kind: input, shape index: {}]
  %s3 = inlined_call_operand.hbm [shape: f32[12,24,512], index: 3, kind: output, shape index: {}]
  %s4 = sld [smem:[#allocation0]]
  $region57: #{tpu_custom_call.1} parent=0
    _
  %s6 = ssub.s32 1, %s4
  %s7 = scalar_select 0, %s6, %s4
  $region1: #{tpu_custom_call.1} parent=0
    #allocation2 [shape = 'u8[24576]{0}', space=vmem, size = 0x6000, scoped, tag = 'input window, operand 0']
    #allocation3 [shape = 's32[2]{0}', space=sflag, size = 0x8, scoped, tag = 'scoped memory for tpu_custom_call.1']
    #allocation4 [shape = 's32[2]{0}', space=sflag, size = 0x8, scoped, tag = 'scoped memory for tpu_custom_call.1']
    #allocation5 [shape = 'u8[16384]{0}', space=vmem, size = 0x4000, scoped, tag = 'input window, operand 1, single buffered']
    #allocation6 [shape = 's32[1]{0}', space=sflag, size = 0x4, scoped, tag = 'scoped memory for tpu_custom_call.1']
    #allocation7 [shape = 'u8[393216]{0}', space=vmem, size = 0x60000, scoped, tag = 'input window, operand 2']
    #allocation8 [shape = 'u8[589824]{0}', space=vmem, size = 0x90000, scoped, tag = 'output window, operand 0']
    %8 = vsyncpa [#allocation3], 0
    %s9 = scalar_lea.sflag [#allocation3], 1
    %10 = vsyncpa %s9, 0
    %11 = vsyncpa [#allocation6], 0
    %12 = vsyncpa [#allocation4], 0
    %s13 = scalar_lea.sflag [#allocation4], 1
    %14 = vsyncpa %s13, 0
    loop: start=0, step=1, limit=4
    $region2: #{tpu_custom_call.1} parent=1 // loop_pre_header
      _
    $region3: #{tpu_custom_call.1} parent=1 // loop_header
      %s16 = sphi 0, %s20
      %p17 = scmp.ge.s32.totalorder %s16, 4
      %s26 = sphi 0, %s28
      %s29 = sphi 0, %s26
      %s30 = sphi 0, %s29
      %s46 = sphi 0, %s30
      %s50 = sphi 0, %s50
      %s52 = sphi 0, %s50
      %s53 = sphi 0, %s52
      %s67 = sphi 0, %s53
      %s73 = sphi 0, %s75
      %s76 = sphi 0, %s73
      %s77 = sphi 0, %s76
      %s93 = sphi 0, %s77
      %s99 = sphi 0, %s101
      %s102 = sphi 0, %s99
      %s103 = sphi 0, %s102
      %s119 = sphi 0, %s103
    $region4: #{tpu_custom_call.1} parent=1 // loop_header_branch
      %19 = sbr.rel (%p17) target = $region8
    $region5: #{tpu_custom_call.1} parent=1 // loop_body
      %s21 = ssub.s32 %s16, 1
      %s22 = ssub.s32 %s16, 2
      %s23 = sadd.s32 %s16, 1
      %s24 = ssub.s32 %s16, %s23
      %p25 = scmp.eq.s32.totalorder %s24, 0
      %s27 = sadd.s32 %s26, 1
      %s28 = scalar_select %p25, %s26, %s27
      %p31 = pneg %p25
      %p32 = scmp.eq.s32.totalorder %s16, 1
      %p33 = por %p31, %p32
      %p34 = scmp.ne.s32.totalorder %s26, %s29
      %p35 = scmp.eq.s32.totalorder %s16, 0
      %p36 = por %p34, %p35
      %p37 = scmp.ne.s32.totalorder %s26, %s29
      %p38 = scmp.eq.s32.totalorder %s21, 1
      %p39 = por %p37, %p38
      %p40 = scmp.ne.s32.totalorder %s29, %s30
      %p41 = scmp.eq.s32.totalorder %s21, 0
      %p42 = por %p40, %p41
      %p43 = scmp.ne.s32.totalorder %s29, %s30
      %p44 = scmp.eq.s32.totalorder %s22, 1
      %p45 = por %p43, %p44
      %p47 = scmp.ne.s32.totalorder %s30, %s46
      %p48 = scmp.eq.s32.totalorder %s22, 0
      %p49 = por %p47, %p48
      %s51 = sadd.s32 %s50, 1
      %p54 = scmp.eq.s32.totalorder %s16, 1
      %p55 = scmp.ne.s32.totalorder %s50, %s52
      %p56 = scmp.eq.s32.totalorder %s16, 0
      %p57 = por %p55, %p56
      %p58 = scmp.ne.s32.totalorder %s50, %s52
      %p59 = scmp.eq.s32.totalorder %s21, 1
      %p60 = por %p58, %p59
      %p61 = scmp.ne.s32.totalorder %s52, %s53
      %p62 = scmp.eq.s32.totalorder %s21, 0
      %p63 = por %p61, %p62
      %p64 = scmp.ne.s32.totalorder %s52, %s53
      %p65 = scmp.eq.s32.totalorder %s22, 1
      %p66 = por %p64, %p65
      %p68 = scmp.ne.s32.totalorder %s53, %s67
      %p69 = scmp.eq.s32.totalorder %s22, 0
      %p70 = por %p68, %p69
      %s71 = ssub.s32 %s16, %s23
      %p72 = scmp.eq.s32.totalorder %s71, 0
      %s74 = sadd.s32 %s73, 1
      %s75 = scalar_select %p72, %s73, %s74
      %p78 = pneg %p72
      %p79 = scmp.eq.s32.totalorder %s16, 1
      %p80 = por %p78, %p79
      %p81 = scmp.ne.s32.totalorder %s73, %s76
      %p82 = scmp.eq.s32.totalorder %s16, 0
      %p83 = por %p81, %p82
      %p84 = scmp.ne.s32.totalorder %s73, %s76
      %p85 = scmp.eq.s32.totalorder %s21, 1
      %p86 = por %p84, %p85
      %p87 = scmp.ne.s32.totalorder %s76, %s77
      %p88 = scmp.eq.s32.totalorder %s21, 0
      %p89 = por %p87, %p88
      %p90 = scmp.ne.s32.totalorder %s76, %s77
      %p91 = scmp.eq.s32.totalorder %s22, 1
      %p92 = por %p90, %p91
      %p94 = scmp.ne.s32.totalorder %s77, %s93
      %p95 = scmp.eq.s32.totalorder %s22, 0
      %p96 = por %p94, %p95
      %s97 = ssub.s32 %s16, %s23
      %p98 = scmp.eq.s32.totalorder %s97, 0
      %s100 = sadd.s32 %s99, 1
      %s101 = scalar_select %p98, %s99, %s100
      %p104 = pneg %p98
      %p105 = scmp.eq.s32.totalorder %s16, 1
      %p106 = por %p104, %p105
      %p107 = scmp.ne.s32.totalorder %s99, %s102
      %p108 = scmp.eq.s32.totalorder %s16, 0
      %p109 = por %p107, %p108
      %p110 = scmp.ne.s32.totalorder %s99, %s102
      %p111 = scmp.eq.s32.totalorder %s21, 1
      %p112 = por %p110, %p111
      %p113 = scmp.ne.s32.totalorder %s102, %s103
      %p114 = scmp.eq.s32.totalorder %s21, 0
      %p115 = por %p113, %p114
      %p116 = scmp.ne.s32.totalorder %s102, %s103
      %p117 = scmp.eq.s32.totalorder %s22, 1
      %p118 = por %p116, %p117
      %p120 = scmp.ne.s32.totalorder %s103, %s119
      %p121 = scmp.eq.s32.totalorder %s22, 0
      %p122 = por %p120, %p121
      %p123 = scmp.le.s32.totalorder 1, %s16
      %p124 = scmp.lt.s32.totalorder %s16, 3
      %p125 = pnand %p123, %p124
      %p126 = pneg %p125
      // Predicated region
      $region9: #{tpu_custom_call.1} parent=5 // pred_check
        _
      $region10: #{tpu_custom_call.1} parent=5 // pred_check_branch
        %128 = sbr.rel (%p125) target = $region12
      $region11: #{tpu_custom_call.1} parent=5 // pred_region
        %s129 = ssub.s32 %s16, 1
        // Predicated region
        $region13: #{tpu_custom_call.1} parent=11 // pred_check
          %p130 = pneg %p63
        $region14: #{tpu_custom_call.1} parent=11 // pred_check_branch
          %132 = sbr.rel (%p130) target = $region16
        $region15: #{tpu_custom_call.1} parent=11 // pred_region
          %s134 = ssub.s32 512, 512
          %135 = vsyncadd [#allocation6], %s134
          %s137 = sshll.u32 [#allocation5], 4
          %s138 = int_to_ptr.vmem [resolvable:$true] %s137
          %140 = dma.hbm_to_vmem [thread:$0]  %s1, 512, %s138, [#allocation6]
        $region16: #{tpu_custom_call.1} parent=11 // pred_fallthru
          _
      $region12: #{tpu_custom_call.1} parent=5 // pred_fallthru
        _
      %p141 = scmp.lt.s32.totalorder %s16, 2
      // Predicated region
      $region17: #{tpu_custom_call.1} parent=5 // pred_check
        %p142 = pneg %p141
      $region18: #{tpu_custom_call.1} parent=5 // pred_check_branch
        %144 = sbr.rel (%p142) target = $region20
      $region19: #{tpu_custom_call.1} parent=5 // pred_region
        // Predicated region
        $region21: #{tpu_custom_call.1} parent=19 // pred_check
          %p145 = pneg %p36
        $region22: #{tpu_custom_call.1} parent=19 // pred_check_branch
          %147 = sbr.rel (%p145) target = $region24
        $region23: #{tpu_custom_call.1} parent=19 // pred_region
          %s148 = sand.u32 %s16, 1
          %s149 = scalar_lea.sflag [#allocation3], %s148
          %s150 = sand.u32 %s26, 1
          %s151 = smul.addr %s150, 24
          %s152 = scalar_lea.vmem [#allocation2], %s151
          %s153 = smul.u32 6, %s16
          %s155 = ssub.s32 384, 384
          %156 = vsyncadd %s149, %s155
          %s157 = smul.addr %s153, 4
          %s158 = smul.addr %s157, 16
          %s159 = scalar_lea.hbm %s0, %s158
          %s160 = sshll.u32 %s152, 4
          %s161 = int_to_ptr.vmem [resolvable:$true] %s160
          %166 = dma.hbm_to_vmem [thread:$0]  %s159, 384, %s161, %s149, 64, 64, 4
        $region24: #{tpu_custom_call.1} parent=19 // pred_fallthru
          _
        // Predicated region
        $region25: #{tpu_custom_call.1} parent=19 // pred_check
          %p167 = pneg %p83
        $region26: #{tpu_custom_call.1} parent=19 // pred_check_branch
          %169 = sbr.rel (%p167) target = $region28
        $region27: #{tpu_custom_call.1} parent=19 // pred_region
          %s170 = sand.u32 %s16, 1
          %s171 = scalar_lea.sflag [#allocation3], %s170
          %s172 = sand.u32 %s73, 1
          %s173 = smul.addr %s172, 384
          %s174 = scalar_lea.vmem [#allocation7], %s173
          %s175 = smul.u32 6, %s16
          %s177 = ssub.s32 6144, 6144
          %178 = vsyncadd %s171, %s177
          %s179 = smul.addr %s175, 8
          %s180 = smul.addr %s179, 128
          %s181 = scalar_lea.hbm %s2, %s180
          %s182 = sshll.u32 %s174, 4
          %s183 = int_to_ptr.vmem [resolvable:$true] %s182
          %188 = dma.hbm_to_vmem [thread:$0]  %s181, 6144, %s183, %s171, 512, 512, 32
        $region28: #{tpu_custom_call.1} parent=19 // pred_fallthru
          _
      $region20: #{tpu_custom_call.1} parent=5 // pred_fallthru
        _
      %p189 = scmp.le.s32.totalorder 1, %s16
      %p190 = scmp.lt.s32.totalorder %s16, 3
      %p191 = pnand %p189, %p190
      %p192 = pneg %p191
      // Predicated region
      $region29: #{tpu_custom_call.1} parent=5 // pred_check
        _
      $region30: #{tpu_custom_call.1} parent=5 // pred_check_branch
        %194 = sbr.rel (%p191) target = $region32
      $region31: #{tpu_custom_call.1} parent=5 // pred_region
        %s195 = ssub.s32 %s16, 1
        %s196 = sand.u32 %s21, 1
        %s197 = scalar_lea.sflag [#allocation3], %s196
        %s198 = sand.u32 %s29, 1
        %s199 = smul.addr %s198, 24
        %s200 = scalar_lea.vmem [#allocation2], %s199
        // Predicated region
        $region33: #{tpu_custom_call.1} parent=31 // pred_check
          %p201 = pneg %p42
        $region34: #{tpu_custom_call.1} parent=31 // pred_check_branch
          %203 = sbr.rel (%p201) target = $region36
        $region35: #{tpu_custom_call.1} parent=31 // pred_region
          %204 = dma.done %s197, 384
        $region36: #{tpu_custom_call.1} parent=31 // pred_fallthru
          _
        // Predicated region
        $region37: #{tpu_custom_call.1} parent=31 // pred_check
          %p205 = pneg %p63
        $region38: #{tpu_custom_call.1} parent=31 // pred_check_branch
          %207 = sbr.rel (%p205) target = $region40
        $region39: #{tpu_custom_call.1} parent=31 // pred_region
          %208 = dma.done [#allocation6], 512
        $region40: #{tpu_custom_call.1} parent=31 // pred_fallthru
          _
        %s209 = sand.u32 %s21, 1
        %s210 = scalar_lea.sflag [#allocation3], %s209
        %s211 = sand.u32 %s76, 1
        %s212 = smul.addr %s211, 384
        %s213 = scalar_lea.vmem [#allocation7], %s212
        // Predicated region
        $region41: #{tpu_custom_call.1} parent=31 // pred_check
          %p214 = pneg %p89
        $region42: #{tpu_custom_call.1} parent=31 // pred_check_branch
          %216 = sbr.rel (%p214) target = $region44
        $region43: #{tpu_custom_call.1} parent=31 // pred_region
          %217 = dma.done %s210, 6144
        $region44: #{tpu_custom_call.1} parent=31 // pred_fallthru
          _
        %s218 = sand.u32 %s21, 1
        %s219 = scalar_lea.sflag [#allocation3], %s218
        %s220 = sand.u32 %s29, 1
        %s221 = smul.addr %s220, 24
        %s222 = scalar_lea.vmem [#allocation2], %s221
        %p223 = pneg %p42
        %p224 = pneg %p39
        %p225 = pneg %p63
        %p226 = pneg %p60
        %s227 = sand.u32 %s21, 1
        %s228 = scalar_lea.sflag [#allocation3], %s227
        %s229 = sand.u32 %s76, 1
        %s230 = smul.addr %s229, 384
        %s231 = scalar_lea.vmem [#allocation7], %s230
        %p232 = pneg %p89
        %p233 = pneg %p86
        %p234 = pneg %p115
        %p235 = pneg %p112
        %s236 = sand.u32 %s102, 1
        %s237 = scalar_lea.sflag [#allocation4], %s236
        %s238 = sand.u32 %s102, 1
        %s239 = smul.addr %s238, 576
        %s240 = scalar_lea.vmem [#allocation8], %s239
        %s241 = smul.u32 6, %s21
        %s242 = smul.u32 6, %s21
        %s243 = smul.u32 6, %s21
        %v244 = vld [vmem:[%s200] sm:$0xf]
        %v245 = vld [vmem:[%s200 + $0x4] sm:$0xf]
        %v246 = vld [vmem:[%s200 + $0x8] sm:$0xf]
        %v247 = vld [vmem:[%s200 + $0xc] sm:$0xf]
        %v248 = vld [vmem:[%s200 + $0x10] sm:$0xf]
        %v249 = vld [vmem:[%s200 + $0x14] sm:$0xf]
        %v250 = vlaneseq
        %vm251 = vcmp.ge.s32.totalorder %v250, 0
        %vm252 = vcmp.lt.s32.totalorder %v250, 512
        %vm253 = vmand %vm251, %vm252
        %254 = vst.msk [vmem:[%s240] ss:$8 sm:$0xf] %vm253, %v244
        %255 = vst.msk [vmem:[%s240] ss:$8 sm:$0x0] %vm253, %v244
        %s256 = scalar_lea.vmem %s240, 96 [#allocation8]
        %257 = vst.msk [vmem:[%s256] ss:$8 sm:$0xf] %vm253, %v245
        %258 = vst.msk [vmem:[%s256] ss:$8 sm:$0x0] %vm253, %v245
        %s259 = scalar_lea.vmem %s240, 192 [#allocation8]
        %260 = vst.msk [vmem:[%s259] ss:$8 sm:$0xf] %vm253, %v246
        %261 = vst.msk [vmem:[%s259] ss:$8 sm:$0x0] %vm253, %v246
        %s262 = scalar_lea.vmem %s240, 288 [#allocation8]
        %263 = vst.msk [vmem:[%s262] ss:$8 sm:$0xf] %vm253, %v247
        %264 = vst.msk [vmem:[%s262] ss:$8 sm:$0x0] %vm253, %v247
        %s265 = scalar_lea.vmem %s240, 384 [#allocation8]
        %266 = vst.msk [vmem:[%s265] ss:$8 sm:$0xf] %vm253, %v248
        %267 = vst.msk [vmem:[%s265] ss:$8 sm:$0x0] %vm253, %v248
        %s268 = scalar_lea.vmem %s240, 480 [#allocation8]
        %269 = vst.msk [vmem:[%s268] ss:$8 sm:$0xf] %vm253, %v249
        %270 = vst.msk [vmem:[%s268] ss:$8 sm:$0x0] %vm253, %v249
        %v271 = vld [vmem:[#allocation5] sm:$0xff]
        %v272 = vld [vmem:[#allocation5 + $0x8] sm:$0xff]
        %v273 = vld [vmem:[#allocation5 + $0x10] sm:$0xff]
        %v274 = vld [vmem:[#allocation5 + $0x18] sm:$0xff]
        %v279 = vrot.slane %v271, 7
        %v280 = vrot.slane %v272, 7
        %v281 = vrot.slane %v273, 7
        %v282 = vrot.slane %v274, 7
        %287 = vst [vmem:[%s240] sm:$0xfe] %v279
        %288 = vst [vmem:[%s240 + $0x8] sm:$0xfe] %v280
        %289 = vst [vmem:[%s240 + $0x10] sm:$0xfe] %v281
        %290 = vst [vmem:[%s240 + $0x18] sm:$0xfe] %v282
        %291 = vst [vmem:[%s240 + $0x20] sm:$0x1] %v279
        %292 = vst [vmem:[%s240 + $0x28] sm:$0x1] %v280
        %293 = vst [vmem:[%s240 + $0x30] sm:$0x1] %v281
        %294 = vst [vmem:[%s240 + $0x38] sm:$0x1] %v282
        %s295 = scalar_lea.vmem %s240, 96 [#allocation8]
        %296 = vst [vmem:[%s295] sm:$0xfe] %v279
        %297 = vst [vmem:[%s295 + $0x8] sm:$0xfe] %v280
        %298 = vst [vmem:[%s295 + $0x10] sm:$0xfe] %v281
        %299 = vst [vmem:[%s295 + $0x18] sm:$0xfe] %v282
        %300 = vst [vmem:[%s295 + $0x20] sm:$0x1] %v279
        %301 = vst [vmem:[%s295 + $0x28] sm:$0x1] %v280
        %302 = vst [vmem:[%s295 + $0x30] sm:$0x1] %v281
        %303 = vst [vmem:[%s295 + $0x38] sm:$0x1] %v282
        %s304 = scalar_lea.vmem %s240, 192 [#allocation8]
        %305 = vst [vmem:[%s304] sm:$0xfe] %v279
        %306 = vst [vmem:[%s304 + $0x8] sm:$0xfe] %v280
        %307 = vst [vmem:[%s304 + $0x10] sm:$0xfe] %v281
        %308 = vst [vmem:[%s304 + $0x18] sm:$0xfe] %v282
        %309 = vst [vmem:[%s304 + $0x20] sm:$0x1] %v279
        %310 = vst [vmem:[%s304 + $0x28] sm:$0x1] %v280
        %311 = vst [vmem:[%s304 + $0x30] sm:$0x1] %v281
        %312 = vst [vmem:[%s304 + $0x38] sm:$0x1] %v282
        %s313 = scalar_lea.vmem %s240, 288 [#allocation8]
        %314 = vst [vmem:[%s313] sm:$0xfe] %v279
        %315 = vst [vmem:[%s313 + $0x8] sm:$0xfe] %v280
        %316 = vst [vmem:[%s313 + $0x10] sm:$0xfe] %v281
        %317 = vst [vmem:[%s313 + $0x18] sm:$0xfe] %v282
        %318 = vst [vmem:[%s313 + $0x20] sm:$0x1] %v279
        %319 = vst [vmem:[%s313 + $0x28] sm:$0x1] %v280
        %320 = vst [vmem:[%s313 + $0x30] sm:$0x1] %v281
        %321 = vst [vmem:[%s313 + $0x38] sm:$0x1] %v282
        %s322 = scalar_lea.vmem %s240, 384 [#allocation8]
        %323 = vst [vmem:[%s322] sm:$0xfe] %v279
        %324 = vst [vmem:[%s322 + $0x8] sm:$0xfe] %v280
        %325 = vst [vmem:[%s322 + $0x10] sm:$0xfe] %v281
        %326 = vst [vmem:[%s322 + $0x18] sm:$0xfe] %v282
        %327 = vst [vmem:[%s322 + $0x20] sm:$0x1] %v279
        %328 = vst [vmem:[%s322 + $0x28] sm:$0x1] %v280
        %329 = vst [vmem:[%s322 + $0x30] sm:$0x1] %v281
        %330 = vst [vmem:[%s322 + $0x38] sm:$0x1] %v282
        %s331 = scalar_lea.vmem %s240, 480 [#allocation8]
        %332 = vst [vmem:[%s331] sm:$0xfe] %v279
        %333 = vst [vmem:[%s331 + $0x8] sm:$0xfe] %v280
        %334 = vst [vmem:[%s331 + $0x10] sm:$0xfe] %v281
        %335 = vst [vmem:[%s331 + $0x18] sm:$0xfe] %v282
        %336 = vst [vmem:[%s331 + $0x20] sm:$0x1] %v279
        %337 = vst [vmem:[%s331 + $0x28] sm:$0x1] %v280
        %338 = vst [vmem:[%s331 + $0x30] sm:$0x1] %v281
        %339 = vst [vmem:[%s331 + $0x38] sm:$0x1] %v282
        %v340 = vld [vmem:[%s213] sm:$0xff]
        %v341 = vld [vmem:[%s213 + $0x8] sm:$0xff]
        %v342 = vld [vmem:[%s213 + $0x10] sm:$0xff]
        %v343 = vld [vmem:[%s213 + $0x18] sm:$0xff]
        %v344 = vld [vmem:[%s213 + $0x20] sm:$0x7f]
        %v345 = vld [vmem:[%s213 + $0x28] sm:$0x7f]
        %v346 = vld [vmem:[%s213 + $0x30] sm:$0x7f]
        %v347 = vld [vmem:[%s213 + $0x38] sm:$0x7f]
        %v348 = vld [vmem:[%s213 + $0x40] sm:$0xff]
        %v349 = vld [vmem:[%s213 + $0x48] sm:$0xff]
        %v350 = vld [vmem:[%s213 + $0x50] sm:$0xff]
        %v351 = vld [vmem:[%s213 + $0x58] sm:$0xff]
        %v352 = vld [vmem:[%s213 + $0x60] sm:$0x7f]
        %v353 = vld [vmem:[%s213 + $0x68] sm:$0x7f]
        %v354 = vld [vmem:[%s213 + $0x70] sm:$0x7f]
        %v355 = vld [vmem:[%s213 + $0x78] sm:$0x7f]
        %v356 = vld [vmem:[%s213 + $0x80] sm:$0xff]
        %v357 = vld [vmem:[%s213 + $0x88] sm:$0xff]
        %v358 = vld [vmem:[%s213 + $0x90] sm:$0xff]
        %v359 = vld [vmem:[%s213 + $0x98] sm:$0xff]
        %v360 = vld [vmem:[%s213 + $0xa0] sm:$0x7f]
        %v361 = vld [vmem:[%s213 + $0xa8] sm:$0x7f]
        %v362 = vld [vmem:[%s213 + $0xb0] sm:$0x7f]
        %v363 = vld [vmem:[%s213 + $0xb8] sm:$0x7f]
        %v364 = vld [vmem:[%s213 + $0xc0] sm:$0xff]
        %v365 = vld [vmem:[%s213 + $0xc8] sm:$0xff]
        %v366 = vld [vmem:[%s213 + $0xd0] sm:$0xff]
        %v367 = vld [vmem:[%s213 + $0xd8] sm:$0xff]
        %v368 = vld [vmem:[%s213 + $0xe0] sm:$0x7f]
        %v369 = vld [vmem:[%s213 + $0xe8] sm:$0x7f]
        %v370 = vld [vmem:[%s213 + $0xf0] sm:$0x7f]
        %v371 = vld [vmem:[%s213 + $0xf8] sm:$0x7f]
        %v372 = vld [vmem:[%s213 + $0x100] sm:$0xff]
        %v373 = vld [vmem:[%s213 + $0x108] sm:$0xff]
        %v374 = vld [vmem:[%s213 + $0x110] sm:$0xff]
        %v375 = vld [vmem:[%s213 + $0x118] sm:$0xff]
        %v376 = vld [vmem:[%s213 + $0x120] sm:$0x7f]
        %v377 = vld [vmem:[%s213 + $0x128] sm:$0x7f]
        %v378 = vld [vmem:[%s213 + $0x130] sm:$0x7f]
        %v379 = vld [vmem:[%s213 + $0x138] sm:$0x7f]
        %v380 = vld [vmem:[%s213 + $0x140] sm:$0xff]
        %v381 = vld [vmem:[%s213 + $0x148] sm:$0xff]
        %v382 = vld [vmem:[%s213 + $0x150] sm:$0xff]
        %v383 = vld [vmem:[%s213 + $0x158] sm:$0xff]
        %v384 = vld [vmem:[%s213 + $0x160] sm:$0x7f]
        %v385 = vld [vmem:[%s213 + $0x168] sm:$0x7f]
        %v386 = vld [vmem:[%s213 + $0x170] sm:$0x7f]
        %v387 = vld [vmem:[%s213 + $0x178] sm:$0x7f]
        %vm436 = vcmask 1040384
        %v437 = vrot.slane %v340, 7
        %v438 = vrot.slane %v341, 7
        %v439 = vrot.slane %v342, 7
        %v440 = vrot.slane %v343, 7
        %v441 = vrot.slane %v344, 7
        %v442 = vsel %vm436, %v437, %v441
        %v443 = vrot.slane %v345, 7
        %v444 = vsel %vm436, %v438, %v443
        %v445 = vrot.slane %v346, 7
        %v446 = vsel %vm436, %v439, %v445
        %v447 = vrot.slane %v347, 7
        %v448 = vsel %vm436, %v440, %v447
        %v449 = vrot.slane %v348, 7
        %v450 = vrot.slane %v349, 7
        %v451 = vrot.slane %v350, 7
        %v452 = vrot.slane %v351, 7
        %v453 = vrot.slane %v352, 7
        %v454 = vsel %vm436, %v449, %v453
        %v455 = vrot.slane %v353, 7
        %v456 = vsel %vm436, %v450, %v455
        %v457 = vrot.slane %v354, 7
        %v458 = vsel %vm436, %v451, %v457
        %v459 = vrot.slane %v355, 7
        %v460 = vsel %vm436, %v452, %v459
        %v461 = vrot.slane %v356, 7
        %v462 = vrot.slane %v357, 7
        %v463 = vrot.slane %v358, 7
        %v464 = vrot.slane %v359, 7
        %v465 = vrot.slane %v360, 7
        %v466 = vsel %vm436, %v461, %v465
        %v467 = vrot.slane %v361, 7
        %v468 = vsel %vm436, %v462, %v467
        %v469 = vrot.slane %v362, 7
        %v470 = vsel %vm436, %v463, %v469
        %v471 = vrot.slane %v363, 7
        %v472 = vsel %vm436, %v464, %v471
        %v473 = vrot.slane %v364, 7
        %v474 = vrot.slane %v365, 7
        %v475 = vrot.slane %v366, 7
        %v476 = vrot.slane %v367, 7
        %v477 = vrot.slane %v368, 7
        %v478 = vsel %vm436, %v473, %v477
        %v479 = vrot.slane %v369, 7
        %v480 = vsel %vm436, %v474, %v479
        %v481 = vrot.slane %v370, 7
        %v482 = vsel %vm436, %v475, %v481
        %v483 = vrot.slane %v371, 7
        %v484 = vsel %vm436, %v476, %v483
        %v485 = vrot.slane %v372, 7
        %v486 = vrot.slane %v373, 7
        %v487 = vrot.slane %v374, 7
        %v488 = vrot.slane %v375, 7
        %v489 = vrot.slane %v376, 7
        %v490 = vsel %vm436, %v485, %v489
        %v491 = vrot.slane %v377, 7
        %v492 = vsel %vm436, %v486, %v491
        %v493 = vrot.slane %v378, 7
        %v494 = vsel %vm436, %v487, %v493
        %v495 = vrot.slane %v379, 7
        %v496 = vsel %vm436, %v488, %v495
        %v497 = vrot.slane %v380, 7
        %v498 = vrot.slane %v381, 7
        %v499 = vrot.slane %v382, 7
        %v500 = vrot.slane %v383, 7
        %v501 = vrot.slane %v384, 7
        %v502 = vsel %vm436, %v497, %v501
        %v503 = vrot.slane %v385, 7
        %v504 = vsel %vm436, %v498, %v503
        %v505 = vrot.slane %v386, 7
        %v506 = vsel %vm436, %v499, %v505
        %v507 = vrot.slane %v387, 7
        %v508 = vsel %vm436, %v500, %v507
        %557 = vst [vmem:[%s240 + $0x20] sm:$0xfe] %v437
        %558 = vst [vmem:[%s240 + $0x28] sm:$0xfe] %v438
        %559 = vst [vmem:[%s240 + $0x30] sm:$0xfe] %v439
        %560 = vst [vmem:[%s240 + $0x38] sm:$0xfe] %v440
        %561 = vst [vmem:[%s240 + $0x40] sm:$0xff] %v442
        %562 = vst [vmem:[%s240 + $0x48] sm:$0xff] %v444
        %563 = vst [vmem:[%s240 + $0x50] sm:$0xff] %v446
        %564 = vst [vmem:[%s240 + $0x58] sm:$0xff] %v448
        %565 = vst [vmem:[%s240 + $0x80] sm:$0xfe] %v449
        %566 = vst [vmem:[%s240 + $0x88] sm:$0xfe] %v450
        %567 = vst [vmem:[%s240 + $0x90] sm:$0xfe] %v451
        %568 = vst [vmem:[%s240 + $0x98] sm:$0xfe] %v452
        %569 = vst [vmem:[%s240 + $0xa0] sm:$0xff] %v454
        %570 = vst [vmem:[%s240 + $0xa8] sm:$0xff] %v456
        %571 = vst [vmem:[%s240 + $0xb0] sm:$0xff] %v458
        %572 = vst [vmem:[%s240 + $0xb8] sm:$0xff] %v460
        %573 = vst [vmem:[%s240 + $0xe0] sm:$0xfe] %v461
        %574 = vst [vmem:[%s240 + $0xe8] sm:$0xfe] %v462
        %575 = vst [vmem:[%s240 + $0xf0] sm:$0xfe] %v463
        %576 = vst [vmem:[%s240 + $0xf8] sm:$0xfe] %v464
        %577 = vst [vmem:[%s240 + $0x100] sm:$0xff] %v466
        %578 = vst [vmem:[%s240 + $0x108] sm:$0xff] %v468
        %579 = vst [vmem:[%s240 + $0x110] sm:$0xff] %v470
        %580 = vst [vmem:[%s240 + $0x118] sm:$0xff] %v472
        %581 = vst [vmem:[%s240 + $0x140] sm:$0xfe] %v473
        %582 = vst [vmem:[%s240 + $0x148] sm:$0xfe] %v474
        %583 = vst [vmem:[%s240 + $0x150] sm:$0xfe] %v475
        %584 = vst [vmem:[%s240 + $0x158] sm:$0xfe] %v476
        %585 = vst [vmem:[%s240 + $0x160] sm:$0xff] %v478
        %586 = vst [vmem:[%s240 + $0x168] sm:$0xff] %v480
        %587 = vst [vmem:[%s240 + $0x170] sm:$0xff] %v482
        %588 = vst [vmem:[%s240 + $0x178] sm:$0xff] %v484
        %589 = vst [vmem:[%s240 + $0x1a0] sm:$0xfe] %v485
        %590 = vst [vmem:[%s240 + $0x1a8] sm:$0xfe] %v486
        %591 = vst [vmem:[%s240 + $0x1b0] sm:$0xfe] %v487
        %592 = vst [vmem:[%s240 + $0x1b8] sm:$0xfe] %v488
        %593 = vst [vmem:[%s240 + $0x1c0] sm:$0xff] %v490
        %594 = vst [vmem:[%s240 + $0x1c8] sm:$0xff] %v492
        %595 = vst [vmem:[%s240 + $0x1d0] sm:$0xff] %v494
        %596 = vst [vmem:[%s240 + $0x1d8] sm:$0xff] %v496
        %597 = vst [vmem:[%s240 + $0x200] sm:$0xfe] %v497
        %598 = vst [vmem:[%s240 + $0x208] sm:$0xfe] %v498
        %599 = vst [vmem:[%s240 + $0x210] sm:$0xfe] %v499
        %600 = vst [vmem:[%s240 + $0x218] sm:$0xfe] %v500
        %601 = vst [vmem:[%s240 + $0x220] sm:$0xff] %v502
        %602 = vst [vmem:[%s240 + $0x228] sm:$0xff] %v504
        %603 = vst [vmem:[%s240 + $0x230] sm:$0xff] %v506
        %604 = vst [vmem:[%s240 + $0x238] sm:$0xff] %v508
        %s605 = sand.u32 %s102, 1
        %s606 = scalar_lea.sflag [#allocation4], %s605
        %s607 = sand.u32 %s102, 1
        %s608 = smul.addr %s607, 576
        %s609 = scalar_lea.vmem [#allocation8], %s608
        // Predicated region
        $region45: #{tpu_custom_call.1} parent=31 // pred_check
          %p610 = pneg %p112
        $region46: #{tpu_custom_call.1} parent=31 // pred_check_branch
          %612 = sbr.rel (%p610) target = $region48
        $region47: #{tpu_custom_call.1} parent=31 // pred_region
          %s613 = smul.u32 6, %s21
          %s615 = ssub.s32 9216, 9216
          %616 = vsyncadd %s606, %s615
          %s617 = smul.addr %s613, 12
          %s618 = smul.addr %s617, 128
          %s619 = scalar_lea.hbm %s3, %s618
          %s620 = sshll.u32 %s609, 4
          %s621 = int_to_ptr.vmem [resolvable:$true] %s620
          %626 = dma.vmem_to_hbm [thread:$0]  %s621, 9216, %s619, %s606, 512, 512, 32
        $region48: #{tpu_custom_call.1} parent=31 // pred_fallthru
          _
      $region32: #{tpu_custom_call.1} parent=5 // pred_fallthru
        _
      %p627 = scmp.le.s32.totalorder 2, %s16
      // Predicated region
      $region49: #{tpu_custom_call.1} parent=5 // pred_check
        %p628 = pneg %p627
      $region50: #{tpu_custom_call.1} parent=5 // pred_check_branch
        %630 = sbr.rel (%p628) target = $region52
      $region51: #{tpu_custom_call.1} parent=5 // pred_region
        %s631 = ssub.s32 %s16, 2
        // Predicated region
        $region53: #{tpu_custom_call.1} parent=51 // pred_check
          %p632 = pneg %p118
        $region54: #{tpu_custom_call.1} parent=51 // pred_check_branch
          %634 = sbr.rel (%p632) target = $region56
        $region55: #{tpu_custom_call.1} parent=51 // pred_region
          %s635 = sand.u32 %s103, 1
          %s636 = scalar_lea.sflag [#allocation4], %s635
          %s637 = sand.u32 %s103, 1
          %s638 = smul.addr %s637, 576
          %s639 = scalar_lea.vmem [#allocation8], %s638
          %640 = dma.done %s636, 9216
        $region56: #{tpu_custom_call.1} parent=51 // pred_fallthru
          _
      $region52: #{tpu_custom_call.1} parent=5 // pred_fallthru
        _
    $region6: #{tpu_custom_call.1} parent=1 // loop_footer
      %s20 = sadd.s32 1, %s16
    $region7: #{tpu_custom_call.1} parent=1 // loop_footer_branch
      %15 = sbr.rel target = $region3
    $region8: #{tpu_custom_call.1} parent=1 // loop_exit
      _
    %641 = vsyncpa [#allocation3], 1
    %s642 = scalar_lea.sflag [#allocation3], 1
    %643 = vsyncpa %s642, 1
    %644 = vsyncpa [#allocation6], 1
    %645 = vsyncpa [#allocation4], 1
    %s646 = scalar_lea.sflag [#allocation4], 1
    %647 = vsyncpa %s646, 1

</llo_original>
